<compile_context>
chip_gen: v5e
topology: v5e:2x2
jax: 0.10.0
libtpu: 0.0.40
codegen_flags: <defaults>
</compile_context>

<pallas_src>
import jax
import jax.numpy as jnp
from jax.experimental import pallas as pl
from jax.experimental.pallas import tpu as pltpu

_LANE = 128
_TARGET_BLOCK_BYTES = 3 * 1024 * 1024  # ~3 MiB per block (in+out, 2x buffered -> 12 MiB VMEM)


def _copy_kernel(x_ref, o_ref):
    # Pure tile copy; in/out share the same block shape, so every store except
    # the single ragged tail block (last T tile / last row tile) is a full,
    # unmasked, lane-dense vst.  The last T tile's *input* block may read a
    # few elements past T_out (one valid element plus Pallas edge padding);
    # those lanes are masked on the output store, so results stay correct.
    o_ref[...] = x_ref[...]


def same_pad_layer(x, num_conv_pos_embeddings=128):
    """Pallas implementation of SamePadLayer.forward for (B, C, T) input."""
    num_pad_remove = 1 if num_conv_pos_embeddings % 2 == 0 else 0
    if num_pad_remove == 0:
        return x  # identity path, nothing to do

    B, C, T = x.shape
    T_out = T - num_pad_remove

    # Tiny-T path: the tensor is small and pallas_call fixed cost exceeds the
    # copy itself; a plain slice is fused into neighbours by XLA for free.
    if T_out < _LANE:
        return x[:, :, :T_out]

    itemsize = jnp.dtype(x.dtype).itemsize
    # Sublane packing: keep the row tile a multiple of 8 (f32) / 16 (bf16) /
    # 32 (int8) so every store stays a full unmasked vst.
    sub = 8 * max(1, 4 // itemsize)

    # Flatten (B, C) -> rows; contiguous reshape, free.
    R = B * C
    x2 = x.reshape(R, T)

    # Lane tile: multiple of 128, up to 1024.
    T_tile = min(1024, (T_out // _LANE) * _LANE)
    # Row tile: fill the ~3 MiB byte budget, rounded down to the sublane pack.
    rows_for_target = max(sub, (_TARGET_BLOCK_BYTES // (T_tile * itemsize) // sub) * sub)
    R_tile = R if R <= rows_for_target else rows_for_target

    idx = lambda r, t: (r, t)
    out2 = pl.pallas_call(
        _copy_kernel,
        out_shape=jax.ShapeDtypeStruct((R, T_out), x.dtype),
        grid=(pl.cdiv(R, R_tile), pl.cdiv(T_out, T_tile)),
        in_specs=[pl.BlockSpec((R_tile, T_tile), idx)],
        out_specs=pl.BlockSpec((R_tile, T_tile), idx),
        compiler_params=pltpu.CompilerParams(
            dimension_semantics=("parallel", "parallel"),
        ),
        cost_estimate=pl.CostEstimate(
            flops=0,
            transcendentals=0,
            bytes_accessed=2 * R * T_out * itemsize,
        ),
    )(x2)
    return out2.reshape(B, C, T_out)


if __name__ == "__main__":
    key = jax.random.PRNGKey(0)
    k0, k1, k2 = jax.random.split(key, 3)

    # 1) Small shape consistent with the module -> fused-slice fallback path.
    B, C, T = 2, 4, 16
    x = jax.random.normal(k0, (B, C, T), dtype=jnp.float32)
    y = jax.block_until_ready(same_pad_layer(x, num_conv_pos_embeddings=128))
    assert y.shape == (B, C, T - 1), y.shape
    assert jnp.array_equal(y, x[:, :, :-1]), "mismatch (fallback path)"

    # 2) Shape exercising the Pallas tiled path (f32), including a ragged tail
    #    T block (T_out = 306 -> T_tile = 256, last block partial).
    B2, C2, T2 = 2, 8, 307
    x2 = jax.random.normal(k1, (B2, C2, T2), dtype=jnp.float32)
    y2 = jax.block_until_ready(same_pad_layer(x2, num_conv_pos_embeddings=128))
    assert y2.shape == (B2, C2, T2 - 1), y2.shape
    assert jnp.array_equal(y2, x2[:, :, :-1]), "mismatch (tiled path, f32)"

    # 3) bf16 shape exercising the 16-row sublane packing on the tiled path.
    B3, C3, T3 = 2, 24, 300
    x3 = jax.random.normal(k2, (B3, C3, T3), dtype=jnp.float32).astype(jnp.bfloat16)
    y3 = jax.block_until_ready(same_pad_layer(x3, num_conv_pos_embeddings=128))
    assert y3.shape == (B3, C3, T3 - 1), y3.shape
    assert jnp.array_equal(y3, x3[:, :, :-1]), "mismatch (tiled path, bf16)"

    # 4) Identity path for odd num_conv_pos_embeddings.
    y_id = jax.block_until_ready(same_pad_layer(x, num_conv_pos_embeddings=127))
    assert jnp.array_equal(y_id, x), "identity path mismatch"

    print("KERNEL_OK")
</pallas_src>

<mosaic_0001>
module attributes {stable_mosaic.version = 11 : i64} {
  func.func @_copy_kernel(%arg0: i32, %arg1: i32, %arg2: memref<16x256xf32, #tpu.memory_space<vmem>>, %arg3: memref<16x256xf32, #tpu.memory_space<vmem>>) attributes {dimension_semantics = [#tpu.dimension_semantics<parallel>, #tpu.dimension_semantics<parallel>], iteration_bounds = array<i64: 1, 2>, scalar_prefetch = 0 : i64, scratch_operands = 0 : i64, tpu.core_type = #tpu.core_type<tc>, window_params = [{transform_indices = @transform_0, window_bounds = array<i64: 16, 256>}, {transform_indices = @transform_1, window_bounds = array<i64: 16, 256>}]} {
    %c0 = arith.constant 0 : index
    %c0_0 = arith.constant 0 : index
    %0 = vector.load %arg2[%c0, %c0_0] : memref<16x256xf32, #tpu.memory_space<vmem>>, vector<16x256xf32>
    %c0_1 = arith.constant 0 : index
    %c0_2 = arith.constant 0 : index
    %1 = vector.load %arg3[%c0_1, %c0_2] : memref<16x256xf32, #tpu.memory_space<vmem>>, vector<16x256xf32>
    tpu.vector_store %arg3[%c0_1, %c0_2], %0 {strides = array<i32>} : memref<16x256xf32, #tpu.memory_space<vmem>>, vector<16x256xf32>,
    return
  }
  func.func @transform_0(%arg0: i32, %arg1: i32) -> (i32, i32) {
    %c0_i32 = arith.constant 0 : i32
    return %arg0, %arg1 : i32, i32
  }
  func.func @transform_1(%arg0: i32, %arg1: i32) -> (i32, i32) {
    %c0_i32 = arith.constant 0 : i32
    return %arg0, %arg1 : i32, i32
  }
}

</mosaic_0001>

<llo_original>
// kernel: tpu_custom_call.1
$region0: #{tpu_custom_call.1}
  #allocation0 [shape = 'u32[]', space=smem, size = 0x4, offset = 0x4, fixed_abs, tag = 'smem constant byte address 0x4 - core index']
  #allocation1 [shape = 'u32[72,128]{1,0:T(1,128)}', space=vmem, size = 0x9000, scoped, tag = 'internal scratch']
  %s0 = inlined_call_operand.hbm [shape: f32[16,307], index: 0, kind: input, shape index: {}]
  %s1 = inlined_call_operand.hbm [shape: f32[16,306], index: 1, kind: output, shape index: {}]
  %s2 = sld [smem:[#allocation0]]
  $region41: #{tpu_custom_call.1} parent=0
    _
  %s4 = ssub.s32 1, %s2
  %s5 = scalar_select 0, %s4, %s2
  $region1: #{tpu_custom_call.1} parent=0
    #allocation2 [shape = 'u8[32768]{0}', space=vmem, size = 0x8000, scoped, tag = 'input window, operand 0']
    #allocation3 [shape = 's32[2]{0}', space=sflag, size = 0x8, scoped, tag = 'scoped memory for tpu_custom_call.1']
    #allocation4 [shape = 's32[2]{0}', space=sflag, size = 0x8, scoped, tag = 'scoped memory for tpu_custom_call.1']
    #allocation5 [shape = 'u8[32768]{0}', space=vmem, size = 0x8000, scoped, tag = 'output window, operand 0']
    %6 = vsyncpa [#allocation3], 0
    %s7 = scalar_lea.sflag [#allocation3], 1
    %8 = vsyncpa %s7, 0
    %9 = vsyncpa [#allocation4], 0
    %s10 = scalar_lea.sflag [#allocation4], 1
    %11 = vsyncpa %s10, 0
    loop: start=0, step=1, limit=4
    $region2: #{tpu_custom_call.1} parent=1 // loop_pre_header
      _
    $region3: #{tpu_custom_call.1} parent=1 // loop_header
      %s13 = sphi 0, %s17
      %p14 = scmp.ge.s32.totalorder %s13, 4
      %s20 = sphi 0, %s32
      %s21 = sphi 0, %s28
      %s22 = sphi 0, %s20
      %s23 = sphi 0, %s21
      %s24 = sphi 0, %s22
      %s25 = sphi 0, %s23
      %s37 = sphi 0, %s39
      %s40 = sphi 0, %s37
      %s41 = sphi 0, %s40
      %s57 = sphi 0, %s41
      %s65 = sphi 0, %s67
      %s68 = sphi 0, %s65
      %s69 = sphi 0, %s68
      %s85 = sphi 0, %s69
    $region4: #{tpu_custom_call.1} parent=1 // loop_header_branch
      %16 = sbr.rel (%p14) target = $region8
    $region5: #{tpu_custom_call.1} parent=1 // loop_body
      %s18 = ssub.s32 %s13, 1
      %s19 = ssub.s32 %s13, 2
      %s26 = sadd.s32 1, %s21
      %p27 = scmp.ge.s32.totalorder %s26, 2
      %s28 = scalar_select %p27, 0, %s26
      %s29 = sadd.s32 1, %s20
      %s30 = scalar_select %p27, %s29, %s20
      %p31 = scmp.ge.s32.totalorder %s30, 1
      %s32 = scalar_select %p31, 0, %s30
      %s33 = ssub.s32 %s20, %s32
      %s34 = ssub.s32 %s21, %s28
      %s35 = sor.u32 %s33, %s34
      %p36 = scmp.eq.s32.totalorder %s35, 0
      %s38 = sadd.s32 %s37, 1
      %s39 = scalar_select %p36, %s37, %s38
      %p42 = pneg %p36
      %p43 = scmp.eq.s32.totalorder %s13, 1
      %p44 = por %p42, %p43
      %p45 = scmp.ne.s32.totalorder %s37, %s40
      %p46 = scmp.eq.s32.totalorder %s13, 0
      %p47 = por %p45, %p46
      %p48 = scmp.ne.s32.totalorder %s37, %s40
      %p49 = scmp.eq.s32.totalorder %s18, 1
      %p50 = por %p48, %p49
      %p51 = scmp.ne.s32.totalorder %s40, %s41
      %p52 = scmp.eq.s32.totalorder %s18, 0
      %p53 = por %p51, %p52
      %p54 = scmp.ne.s32.totalorder %s40, %s41
      %p55 = scmp.eq.s32.totalorder %s19, 1
      %p56 = por %p54, %p55
      %p58 = scmp.ne.s32.totalorder %s41, %s57
      %p59 = scmp.eq.s32.totalorder %s19, 0
      %p60 = por %p58, %p59
      %s61 = ssub.s32 %s20, %s32
      %s62 = ssub.s32 %s21, %s28
      %s63 = sor.u32 %s61, %s62
      %p64 = scmp.eq.s32.totalorder %s63, 0
      %s66 = sadd.s32 %s65, 1
      %s67 = scalar_select %p64, %s65, %s66
      %p70 = pneg %p64
      %p71 = scmp.eq.s32.totalorder %s13, 1
      %p72 = por %p70, %p71
      %p73 = scmp.ne.s32.totalorder %s65, %s68
      %p74 = scmp.eq.s32.totalorder %s13, 0
      %p75 = por %p73, %p74
      %p76 = scmp.ne.s32.totalorder %s65, %s68
      %p77 = scmp.eq.s32.totalorder %s18, 1
      %p78 = por %p76, %p77
      %p79 = scmp.ne.s32.totalorder %s68, %s69
      %p80 = scmp.eq.s32.totalorder %s18, 0
      %p81 = por %p79, %p80
      %p82 = scmp.ne.s32.totalorder %s68, %s69
      %p83 = scmp.eq.s32.totalorder %s19, 1
      %p84 = por %p82, %p83
      %p86 = scmp.ne.s32.totalorder %s69, %s85
      %p87 = scmp.eq.s32.totalorder %s19, 0
      %p88 = por %p86, %p87
      %p89 = scmp.le.s32.totalorder 1, %s13
      %p90 = scmp.lt.s32.totalorder %s13, 3
      %p91 = pnand %p89, %p90
      %p92 = pneg %p91
      // Predicated region
      $region9: #{tpu_custom_call.1} parent=5 // pred_check
        _
      $region10: #{tpu_custom_call.1} parent=5 // pred_check_branch
        %94 = sbr.rel (%p91) target = $region12
      $region11: #{tpu_custom_call.1} parent=5 // pred_region
        %s95 = ssub.s32 %s13, 1
      $region12: #{tpu_custom_call.1} parent=5 // pred_fallthru
        _
      %p96 = scmp.lt.s32.totalorder %s13, 2
      // Predicated region
      $region13: #{tpu_custom_call.1} parent=5 // pred_check
        %p97 = pneg %p96
      $region14: #{tpu_custom_call.1} parent=5 // pred_check_branch
        %99 = sbr.rel (%p97) target = $region16
      $region15: #{tpu_custom_call.1} parent=5 // pred_region
        // Predicated region
        $region17: #{tpu_custom_call.1} parent=15 // pred_check
          %p100 = pneg %p47
        $region18: #{tpu_custom_call.1} parent=15 // pred_check_branch
          %102 = sbr.rel (%p100) target = $region20
        $region19: #{tpu_custom_call.1} parent=15 // pred_region
          %s103 = sand.u32 %s37, 1
          %s104 = scalar_lea.sflag [#allocation3], %s103
          %s105 = sand.u32 %s37, 1
          %s106 = smul.addr %s105, 32
          %s107 = scalar_lea.vmem [#allocation2], %s106
          %s108 = smul.u32 2, %s20
          %s109 = smul.u32 2, %s21
          %s110 = ssub.s32 3, %s109
          %p111 = scmp.lt.s32.totalorder %s110, 2
          %s112 = scalar_select %p111, %s110, 2
          %s113 = smul.u32 16, %s112
          %s114 = ssub.s32 32, %s113
          %s115 = sshll.u32 %s114, 4
          %116 = vsyncadd %s104, %s115
          %p117 = scmp.ne.s32.totalorder 0, %s113
          %s118 = smul.addr %s108, 3
          %s119 = sadd.s32 %s109, %s118
          %s120 = smul.addr %s119, 8
          %s121 = scalar_lea.hbm %s0, %s120
          %s122 = smul.u32 %s112, 8
          %s123 = smul.u32 %s122, 2
          %s124 = sshll.u32 %s121, 4
          %s125 = int_to_ptr.hbm [resolvable:$true] %s124
          %s126 = sshll.u32 %s107, 4
          %s127 = int_to_ptr.vmem [resolvable:$true] %s126
          %s128 = sshll.u32 %s123, 4
          %132 = dma.hbm_to_vmem [thread:$0]  (%p117), %s125, %s128, %s127, %s104, 384, 256, %s122
        $region20: #{tpu_custom_call.1} parent=15 // pred_fallthru
          _
      $region16: #{tpu_custom_call.1} parent=5 // pred_fallthru
        _
      %p133 = scmp.le.s32.totalorder 1, %s13
      %p134 = scmp.lt.s32.totalorder %s13, 3
      %p135 = pnand %p133, %p134
      %p136 = pneg %p135
      // Predicated region
      $region21: #{tpu_custom_call.1} parent=5 // pred_check
        _
      $region22: #{tpu_custom_call.1} parent=5 // pred_check_branch
        %138 = sbr.rel (%p135) target = $region24
      $region23: #{tpu_custom_call.1} parent=5 // pred_region
        %s139 = ssub.s32 %s13, 1
        %s140 = sand.u32 %s40, 1
        %s141 = scalar_lea.sflag [#allocation3], %s140
        %s142 = sand.u32 %s40, 1
        %s143 = smul.addr %s142, 32
        %s144 = scalar_lea.vmem [#allocation2], %s143
        // Predicated region
        $region25: #{tpu_custom_call.1} parent=23 // pred_check
          %p145 = pneg %p53
        $region26: #{tpu_custom_call.1} parent=23 // pred_check_branch
          %147 = sbr.rel (%p145) target = $region28
        $region27: #{tpu_custom_call.1} parent=23 // pred_region
          %149 = dma.done %s141, 512
        $region28: #{tpu_custom_call.1} parent=23 // pred_fallthru
          _
        %s150 = sand.u32 %s40, 1
        %s151 = scalar_lea.sflag [#allocation3], %s150
        %s152 = sand.u32 %s40, 1
        %s153 = smul.addr %s152, 32
        %s154 = scalar_lea.vmem [#allocation2], %s153
        %p155 = pneg %p53
        %p156 = pneg %p50
        %p157 = pneg %p81
        %p158 = pneg %p78
        %s159 = sand.u32 %s68, 1
        %s160 = scalar_lea.sflag [#allocation4], %s159
        %s161 = sand.u32 %s68, 1
        %s162 = smul.addr %s161, 32
        %s163 = scalar_lea.vmem [#allocation5], %s162
        %s164 = smul.u32 2, %s22
        %s165 = smul.u32 2, %s23
        %s166 = ssub.s32 3, %s165
        %p167 = scmp.lt.s32.totalorder %s166, 2
        %s168 = scalar_select %p167, %s166, 2
        %s169 = smul.u32 16, %s168
        %s170 = smul.u32 2, %s22
        %s171 = smul.u32 2, %s23
        %s172 = ssub.s32 3, %s171
        %p173 = scmp.lt.s32.totalorder %s172, 2
        %s174 = scalar_select %p173, %s172, 2
        %s175 = smul.u32 16, %s174
        %v176 = vld [vmem:[%s144] sm:$0xff]
        %v177 = vld [vmem:[%s144 + $0x8] sm:$0xff]
        %v178 = vld [vmem:[%s144 + $0x10] sm:$0xff]
        %v179 = vld [vmem:[%s144 + $0x18] sm:$0xff]
        %180 = vst [vmem:[%s163] sm:$0xff] %v176
        %181 = vst [vmem:[%s163 + $0x8] sm:$0xff] %v177
        %182 = vst [vmem:[%s163 + $0x10] sm:$0xff] %v178
        %183 = vst [vmem:[%s163 + $0x18] sm:$0xff] %v179
        %s184 = sand.u32 %s68, 1
        %s185 = scalar_lea.sflag [#allocation4], %s184
        %s186 = sand.u32 %s68, 1
        %s187 = smul.addr %s186, 32
        %s188 = scalar_lea.vmem [#allocation5], %s187
        // Predicated region
        $region29: #{tpu_custom_call.1} parent=23 // pred_check
          %p189 = pneg %p78
        $region30: #{tpu_custom_call.1} parent=23 // pred_check_branch
          %191 = sbr.rel (%p189) target = $region32
        $region31: #{tpu_custom_call.1} parent=23 // pred_region
          %s192 = smul.u32 2, %s22
          %s193 = smul.u32 2, %s23
          %s194 = ssub.s32 3, %s193
          %p195 = scmp.lt.s32.totalorder %s194, 2
          %s196 = scalar_select %p195, %s194, 2
          %s197 = smul.u32 16, %s196
          %s198 = ssub.s32 32, %s197
          %s199 = sshll.u32 %s198, 4
          %200 = vsyncadd %s185, %s199
          %p201 = scmp.ne.s32.totalorder 0, %s197
          %s202 = smul.addr %s192, 3
          %s203 = sadd.s32 %s193, %s202
          %s204 = smul.addr %s203, 8
          %s205 = scalar_lea.hbm %s1, %s204
          %s206 = smul.u32 %s196, 8
          %s207 = smul.u32 %s206, 2
          %s208 = sshll.u32 %s188, 4
          %s209 = int_to_ptr.vmem [resolvable:$true] %s208
          %s210 = sshll.u32 %s205, 4
          %s211 = int_to_ptr.hbm [resolvable:$true] %s210
          %s212 = sshll.u32 %s207, 4
          %216 = dma.vmem_to_hbm [thread:$0]  (%p201), %s209, %s212, %s211, %s185, 256, 384, %s206
        $region32: #{tpu_custom_call.1} parent=23 // pred_fallthru
          _
      $region24: #{tpu_custom_call.1} parent=5 // pred_fallthru
        _
      %p217 = scmp.le.s32.totalorder 2, %s13
      // Predicated region
      $region33: #{tpu_custom_call.1} parent=5 // pred_check
        %p218 = pneg %p217
      $region34: #{tpu_custom_call.1} parent=5 // pred_check_branch
        %220 = sbr.rel (%p218) target = $region36
      $region35: #{tpu_custom_call.1} parent=5 // pred_region
        %s221 = ssub.s32 %s13, 2
        // Predicated region
        $region37: #{tpu_custom_call.1} parent=35 // pred_check
          %p222 = pneg %p84
        $region38: #{tpu_custom_call.1} parent=35 // pred_check_branch
          %224 = sbr.rel (%p222) target = $region40
        $region39: #{tpu_custom_call.1} parent=35 // pred_region
          %s225 = sand.u32 %s69, 1
          %s226 = scalar_lea.sflag [#allocation4], %s225
          %s227 = sand.u32 %s69, 1
          %s228 = smul.addr %s227, 32
          %s229 = scalar_lea.vmem [#allocation5], %s228
          %231 = dma.done %s226, 512
        $region40: #{tpu_custom_call.1} parent=35 // pred_fallthru
          _
      $region36: #{tpu_custom_call.1} parent=5 // pred_fallthru
        _
    $region6: #{tpu_custom_call.1} parent=1 // loop_footer
      %s17 = sadd.s32 1, %s13
    $region7: #{tpu_custom_call.1} parent=1 // loop_footer_branch
      %12 = sbr.rel target = $region3
    $region8: #{tpu_custom_call.1} parent=1 // loop_exit
      _
    %232 = vsyncpa [#allocation3], 1
    %s233 = scalar_lea.sflag [#allocation3], 1
    %234 = vsyncpa %s233, 1
    %235 = vsyncpa [#allocation4], 1
    %s236 = scalar_lea.sflag [#allocation4], 1
    %237 = vsyncpa %s236, 1

</llo_original>
